<compile_context>
chip_gen: v5e
topology: v5e:2x2
jax: 0.10.0
libtpu: 0.0.40
codegen_flags: <defaults>
</compile_context>

<pallas_src>
import functools

import jax
import jax.numpy as jnp
from jax.experimental import pallas as pl
from jax.experimental.pallas import tpu as pltpu


# ----------------------------------------------------------------------------
# Kernel: shared Conv1d (valid) + nonlinearity + per-phase MaxPool1d(P)
# for one tile of TB batch rows.
# ----------------------------------------------------------------------------
def _conv_pool_kernel(x_ref, w_ref, b_ref, o_ref, *, K, P, Lconv, Lpool,
                      nonlinearity, prelu_alpha):
    TB, Lpad, E = x_ref.shape
    H = w_ref.shape[1]

    x = x_ref[...]                                       # (TB, Lpad, E)

    # --- im2col: one MXU push with contraction K*E instead of K small dots.
    cols = [x[:, k:k + Lconv, :] for k in range(K)]      # K shifted views
    xcat = jnp.concatenate(cols, axis=-1)                # (TB, Lconv, K*E)
    xcat = xcat.reshape(TB * Lconv, K * E)

    acc = jnp.dot(xcat, w_ref[...],
                  preferred_element_type=jnp.float32)    # (TB*Lconv, H)
    acc = acc + b_ref[...]                               # (1, H) broadcast

    # --- nonlinearity (selected statically at trace time).
    if nonlinearity == "tanh":
        acc = jnp.tanh(acc)
    elif nonlinearity == "relu":
        acc = jnp.maximum(acc, 0.0)
    else:  # prelu (single learnable alpha, torch init 0.25)
        acc = jnp.where(acc >= 0.0, acc, prelu_alpha * acc)

    a = acc.reshape(TB, Lconv, H)                        # shared conv output

    # --- fused phase shift + MaxPool1d(P):
    #     out[b, j, m, :] = max_{p<P} a[b, j + m*P + p, :]
    # Sliding max over P contiguous shifted views (pure VPU maximum), then a
    # single reshape; phase j is just the stride-P slot q == j.
    s = a[:, 0:Lpool * P, :]
    for p in range(1, P):
        s = jnp.maximum(s, a[:, p:p + Lpool * P, :])
    s = s.reshape(TB, Lpool, P, H)
    for j in range(P):
        o_ref[:, j, :, :] = s[:, :, j, :]

    # TODO(synk): F.dropout(training=True) not implemented; inference/identity
    # semantics are reproduced (training would use pltpu.prng_* masking).


# ----------------------------------------------------------------------------
# Wrapper
# ----------------------------------------------------------------------------
def conv_base_model_forward(x, weight, bias, *, kernelsize, poolingsize,
                            nonlinearity="relu", prelu_alpha=0.25,
                            block_rows=None):
    """x: (B, L, E) float32.  weight: (H, E, K) (torch Conv1d layout).
    Returns (B*poolingsize, Lpool, H), matching the torch forward."""
    B, L, E = x.shape
    H = weight.shape[0]
    K, P = kernelsize, poolingsize
    padding = (K - 1) // 2

    Lout = L + P                       # per-phase conv output length
    Lpool = Lout // P                  # pooled length (remainder dropped)
    Lconv = Lpool * P + P - 1          # shared conv length covering all phases
    Lpad = Lconv + K - 1               # single padded input length

    # Single zero-pad (replaces the P per-phase padded copies):
    #   X_pad[s] = x[s - padding] if in range else 0
    # so that torch's piece_j[t] == X_pad[t + j] for every phase j.
    right = Lpad - L - padding
    xp = jax.lax.pad(x.astype(jnp.float32), jnp.float32(0.0),
                     [(0, 0, 0), (padding, right, 0), (0, 0, 0)])   # (B, Lpad, E)

    # im2col weight: w2d[k*E + e, h] = weight[h, e, k]
    w2d = jnp.transpose(weight, (2, 1, 0)).reshape(K * E, H).astype(jnp.float32)
    b2d = bias.reshape(1, H).astype(jnp.float32)

    # ---- block-row (TB) selection: as coarse as the VMEM budget allows,
    # but keep >= 2 grid blocks so both TensorCores get work.
    per_row_bytes = 4 * (2 * Lpad * E                # input block (dbl-buffered)
                         + 2 * P * Lpool * H         # output block (dbl-buffered)
                         + Lconv * (K * E + 2 * H))  # im2col + conv temporaries
    if block_rows is None:
        budget = 8 << 20
        tb = max(1, min(B, budget // max(per_row_bytes, 1)))
        if B >= 2:
            tb = min(tb, max(1, B // 2))             # >= 2 blocks for megacore
        while B % tb:
            tb -= 1
    else:
        tb = int(block_rows)
        assert B % tb == 0, "block_rows must divide the batch dimension"
    grid = (B // tb,)

    block_bytes = tb * per_row_bytes + 8 * (K * E * H + H)
    vmem_limit = int(min(64 << 20, max(16 << 20, 4 * block_bytes)))

    kernel = functools.partial(
        _conv_pool_kernel, K=K, P=P, Lconv=Lconv, Lpool=Lpool,
        nonlinearity=nonlinearity, prelu_alpha=prelu_alpha)

    out = pl.pallas_call(
        kernel,
        out_shape=jax.ShapeDtypeStruct((B, P, Lpool, H), jnp.float32),
        grid_spec=pltpu.PrefetchScalarGridSpec(
            num_scalar_prefetch=0,
            grid=grid,
            in_specs=[
                pl.BlockSpec((tb, Lpad, E), lambda n: (n, 0, 0)),
                pl.BlockSpec((K * E, H), lambda n: (0, 0)),
                pl.BlockSpec((1, H), lambda n: (0, 0)),
            ],
            out_specs=pl.BlockSpec((tb, P, Lpool, H), lambda n: (n, 0, 0, 0)),
        ),
        compiler_params=pltpu.CompilerParams(
            dimension_semantics=("parallel",),
            vmem_limit_bytes=vmem_limit),
    )(xp, w2d, b2d)

    # (B, P, Lpool, H) -> (B*P, Lpool, H): pure row-major merge, row order b*P+j
    # matches the torch cat ordering.
    return out.reshape(B * P, Lpool, H)


# ----------------------------------------------------------------------------
# Pure-JAX reference mirroring the torch construction literally (per-phase
# padded copies), used as ground truth for the single-pad reformulation.
# ----------------------------------------------------------------------------
def reference_forward(x, weight, bias, *, kernelsize, poolingsize,
                      nonlinearity="relu", prelu_alpha=0.25):
    K, P = kernelsize, poolingsize
    padding = (K - 1) // 2
    B, L, E = x.shape
    H = weight.shape[0]
    pieces = []
    for b in range(B):                                     # row order b*P + j
        for j in range(P):
            lo = padding - j                               # negative => crop
            hi = K - padding - 1 + j + P
            pieces.append(jax.lax.pad(x[b].astype(jnp.float32), jnp.float32(0.0),
                                      [(lo, hi, 0), (0, 0, 0)]))
    xp = jnp.stack(pieces, axis=0)                         # (B*P, Lp, E)
    N, Lp, _ = xp.shape
    Lout = Lp - K + 1
    Lpool = Lout // P
    w_keh = jnp.transpose(weight, (2, 1, 0))               # (K, E, H)
    out = jnp.zeros((N, Lout, H), jnp.float32)
    for k in range(K):
        out = out + jnp.einsum("nte,eh->nth", xp[:, k:k + Lout, :], w_keh[k])
    out = out + bias.reshape(1, 1, H)
    if nonlinearity == "tanh":
        out = jnp.tanh(out)
    elif nonlinearity == "relu":
        out = jnp.maximum(out, 0.0)
    else:
        out = jnp.where(out >= 0.0, out, prelu_alpha * out)
    out = out[:, : Lpool * P, :].reshape(N, Lpool, P, H).max(axis=2)
    return out


if __name__ == "__main__":
    # Module hyperparameters (small, deterministic).
    embedsize, kernelsize, hiddenunit, poolingsize = 8, 3, 16, 2
    convdropout = 0.1                                      # eval-mode identity

    B, L = 2, 8
    key = jax.random.PRNGKey(0)
    kx, kw, kb = jax.random.split(key, 3)

    x = jax.random.normal(kx, (B, L, embedsize), dtype=jnp.float32)
    # torch Conv1d weight layout: (out_channels, in_channels, kernel_size)
    fan_in = embedsize * kernelsize
    bound = 1.0 / (fan_in ** 0.5)
    weight = jax.random.uniform(kw, (hiddenunit, embedsize, kernelsize),
                                dtype=jnp.float32, minval=-bound, maxval=bound)
    bias = jax.random.uniform(kb, (hiddenunit,), dtype=jnp.float32,
                              minval=-bound, maxval=bound)

    for nl in ("relu", "tanh", "prelu"):
        out = conv_base_model_forward(x, weight, bias,
                                      kernelsize=kernelsize,
                                      poolingsize=poolingsize,
                                      nonlinearity=nl)
        out = jax.block_until_ready(out)
        ref = reference_forward(x, weight, bias,
                                kernelsize=kernelsize,
                                poolingsize=poolingsize,
                                nonlinearity=nl)
        assert out.shape == (B * poolingsize,
                             (L + poolingsize) // poolingsize, hiddenunit)
        assert jnp.allclose(out, ref, atol=1e-5, rtol=1e-5), f"mismatch ({nl})"

    print("KERNEL_OK")
</pallas_src>

<mosaic_0001>
module attributes {stable_mosaic.version = 11 : i64} {
  func.func @_conv_pool_kernel(%arg0: i32, %arg1: memref<1x13x8xf32, #tpu.memory_space<vmem>>, %arg2: memref<24x16xf32, #tpu.memory_space<vmem>>, %arg3: memref<1x16xf32, #tpu.memory_space<vmem>>, %arg4: memref<1x2x5x16xf32, #tpu.memory_space<vmem>>) attributes {dimension_semantics = [#tpu.dimension_semantics<parallel>], iteration_bounds = array<i64: 2>, scalar_prefetch = 0 : i64, scratch_operands = 0 : i64, tpu.core_type = #tpu.core_type<tc>, window_params = [{transform_indices = @transform_0, window_bounds = array<i64: 1, 13, 8>}, {pipeline_mode = #tpu.pipeline_mode<synchronous>, transform_indices = @transform_1, window_bounds = array<i64: 24, 16>}, {pipeline_mode = #tpu.pipeline_mode<synchronous>, transform_indices = @transform_2, window_bounds = array<i64: 1, 16>}, {transform_indices = @transform_3, window_bounds = array<i64: 1, 2, 5, 16>}]} {
    %c0 = arith.constant 0 : index
    %c0_0 = arith.constant 0 : index
    %c0_1 = arith.constant 0 : index
    %0 = vector.load %arg1[%c0, %c0_0, %c0_1] : memref<1x13x8xf32, #tpu.memory_space<vmem>>, vector<1x13x8xf32>
    %1 = vector.extract_strided_slice %0 {offsets = [0, 0, 0], sizes = [1, 11, 8], strides = [1, 1, 1]} : vector<1x13x8xf32> to vector<1x11x8xf32>
    %2 = vector.extract_strided_slice %0 {offsets = [0, 1, 0], sizes = [1, 11, 8], strides = [1, 1, 1]} : vector<1x13x8xf32> to vector<1x11x8xf32>
    %3 = vector.extract_strided_slice %0 {offsets = [0, 2, 0], sizes = [1, 11, 8], strides = [1, 1, 1]} : vector<1x13x8xf32> to vector<1x11x8xf32>
    %4 = tpu.concatenate %1, %2, %3 in 2 : vector<1x11x8xf32>, vector<1x11x8xf32>, vector<1x11x8xf32> -> vector<1x11x24xf32>
    %5 = vector.shape_cast %4 : vector<1x11x24xf32> to vector<11x24xf32>
    %c0_2 = arith.constant 0 : index
    %c0_3 = arith.constant 0 : index
    %6 = vector.load %arg2[%c0_2, %c0_3] : memref<24x16xf32, #tpu.memory_space<vmem>>, vector<24x16xf32>
    %cst = arith.constant dense<0.000000e+00> : vector<11x16xf32>
    %7 = tpu.matmul %5, %6, %cst {dimension_numbers = #tpu.dot_dimension_numbers<[1], [0], [0], [1], [0, 0, 1, 1], [], []>} : vector<11x24xf32>, vector<24x16xf32>, vector<11x16xf32> -> vector<11x16xf32>
    %c0_4 = arith.constant 0 : index
    %c0_5 = arith.constant 0 : index
    %8 = vector.load %arg3[%c0_4, %c0_5] : memref<1x16xf32, #tpu.memory_space<vmem>>, vector<1x16xf32>
    %9 = vector.broadcast %8 : vector<1x16xf32> to vector<11x16xf32>
    %10 = arith.addf %7, %9 : vector<11x16xf32>
    %cst_6 = arith.constant 0.000000e+00 : f32
    %11 = vector.broadcast %cst_6 : f32 to vector<11x16xf32>
    %12 = arith.maximumf %10, %11 : vector<11x16xf32>
    %13 = vector.shape_cast %12 : vector<11x16xf32> to vector<1x11x16xf32>
    %14 = vector.extract_strided_slice %13 {offsets = [0, 0, 0], sizes = [1, 10, 16], strides = [1, 1, 1]} : vector<1x11x16xf32> to vector<1x10x16xf32>
    %15 = vector.extract_strided_slice %13 {offsets = [0, 1, 0], sizes = [1, 10, 16], strides = [1, 1, 1]} : vector<1x11x16xf32> to vector<1x10x16xf32>
    %16 = arith.maximumf %14, %15 : vector<1x10x16xf32>
    %17 = vector.shape_cast %16 : vector<1x10x16xf32> to vector<1x5x2x16xf32>
    %18 = vector.extract_strided_slice %17 {offsets = [0, 0, 0, 0], sizes = [1, 5, 1, 16], strides = [1, 1, 1, 1]} : vector<1x5x2x16xf32> to vector<1x5x1x16xf32>
    %19 = vector.shape_cast %18 : vector<1x5x1x16xf32> to vector<1x5x16xf32>
    %c0_7 = arith.constant 0 : index
    %c0_8 = arith.constant 0 : index
    %c0_9 = arith.constant 0 : index
    %c0_10 = arith.constant 0 : index
    %20 = vector.load %arg4[%c0_7, %c0_8, %c0_9, %c0_10] : memref<1x2x5x16xf32, #tpu.memory_space<vmem>>, vector<1x1x5x16xf32>
    %21 = vector.shape_cast %20 : vector<1x1x5x16xf32> to vector<1x5x16xf32>
    %22 = vector.shape_cast %19 : vector<1x5x16xf32> to vector<1x1x5x16xf32>
    tpu.vector_store %arg4[%c0_7, %c0_8, %c0_9, %c0_10], %22 {strides = array<i32>} : memref<1x2x5x16xf32, #tpu.memory_space<vmem>>, vector<1x1x5x16xf32>,
    %23 = vector.extract_strided_slice %17 {offsets = [0, 0, 1, 0], sizes = [1, 5, 1, 16], strides = [1, 1, 1, 1]} : vector<1x5x2x16xf32> to vector<1x5x1x16xf32>
    %24 = vector.shape_cast %23 : vector<1x5x1x16xf32> to vector<1x5x16xf32>
    %c0_11 = arith.constant 0 : index
    %c1 = arith.constant 1 : index
    %c0_12 = arith.constant 0 : index
    %c0_13 = arith.constant 0 : index
    %25 = vector.load %arg4[%c0_11, %c1, %c0_12, %c0_13] : memref<1x2x5x16xf32, #tpu.memory_space<vmem>>, vector<1x1x5x16xf32>
    %26 = vector.shape_cast %25 : vector<1x1x5x16xf32> to vector<1x5x16xf32>
    %27 = vector.shape_cast %24 : vector<1x5x16xf32> to vector<1x1x5x16xf32>
    tpu.vector_store %arg4[%c0_11, %c1, %c0_12, %c0_13], %27 {strides = array<i32>} : memref<1x2x5x16xf32, #tpu.memory_space<vmem>>, vector<1x1x5x16xf32>,
    return
  }
  func.func @transform_0(%arg0: i32) -> (i32, i32, i32) {
    %c0_i32 = arith.constant 0 : i32
    %c0_i32_0 = arith.constant 0 : i32
    %c0_i32_1 = arith.constant 0 : i32
    return %arg0, %c0_i32, %c0_i32_0 : i32, i32, i32
  }
  func.func @transform_1(%arg0: i32) -> (i32, i32) {
    %c0_i32 = arith.constant 0 : i32
    %c0_i32_0 = arith.constant 0 : i32
    %c0_i32_1 = arith.constant 0 : i32
    return %c0_i32, %c0_i32_0 : i32, i32
  }
  func.func @transform_2(%arg0: i32) -> (i32, i32) {
    %c0_i32 = arith.constant 0 : i32
    %c0_i32_0 = arith.constant 0 : i32
    %c0_i32_1 = arith.constant 0 : i32
    return %c0_i32, %c0_i32_0 : i32, i32
  }
  func.func @transform_3(%arg0: i32) -> (i32, i32, i32, i32) {
    %c0_i32 = arith.constant 0 : i32
    %c0_i32_0 = arith.constant 0 : i32
    %c0_i32_1 = arith.constant 0 : i32
    %c0_i32_2 = arith.constant 0 : i32
    return %arg0, %c0_i32, %c0_i32_0, %c0_i32_1 : i32, i32, i32, i32
  }
}

</mosaic_0001>

<llo_original>
// kernel: tpu_custom_call.1
$region0: #{tpu_custom_call.1}
  #allocation0 [shape = 'u32[]', space=smem, size = 0x4, offset = 0x4, fixed_abs, tag = 'smem constant byte address 0x4 - core index']
  #allocation1 [shape = 'u32[72,128]{1,0:T(1,128)}', space=vmem, size = 0x9000, scoped, tag = 'internal scratch']
  %s0 = inlined_call_operand.vmem [shape: f32[2,13,8], index: 0, kind: input, shape index: {}]
  %s1 = inlined_call_operand.vmem [shape: f32[24,16], index: 1, kind: input, shape index: {}]
  %s2 = inlined_call_operand.vmem [shape: f32[1,16], index: 2, kind: input, shape index: {}]
  %s3 = inlined_call_operand.vmem [shape: f32[2,2,5,16], index: 3, kind: output, shape index: {}]
  %s4 = sld [smem:[#allocation0]]
  $region45: #{tpu_custom_call.1} parent=0
    _
  %s6 = ssub.s32 1, %s4
  %s7 = scalar_select 0, %s6, %s4
  loop: start=0, step=1, limit=4
  $region2: #{tpu_custom_call.1} parent=0 // loop_pre_header
    _
  $region3: #{tpu_custom_call.1} parent=0 // loop_header
    %s9 = sphi 0, %s13
    %p10 = scmp.ge.s32.totalorder %s9, 4
    %s19 = sphi 0, %s21
    %s22 = sphi 0, %s19
    %s23 = sphi 0, %s22
    %s39 = sphi 0, %s23
    %s43 = sphi 0, %s43
    %s45 = sphi 0, %s43
    %s46 = sphi 0, %s45
    %s60 = sphi 0, %s46
    %s64 = sphi 0, %s64
    %s66 = sphi 0, %s64
    %s67 = sphi 0, %s66
    %s81 = sphi 0, %s67
    %s87 = sphi 0, %s89
    %s90 = sphi 0, %s87
    %s91 = sphi 0, %s90
    %s107 = sphi 0, %s91
  $region4: #{tpu_custom_call.1} parent=0 // loop_header_branch
    %12 = sbr.rel (%p10) target = $region8
  $region5: #{tpu_custom_call.1} parent=0 // loop_body
    %s14 = ssub.s32 %s9, 1
    %s15 = ssub.s32 %s9, 2
    %s16 = sadd.s32 %s9, 1
    %s17 = ssub.s32 %s9, %s16
    %p18 = scmp.eq.s32.totalorder %s17, 0
    %s20 = sadd.s32 %s19, 1
    %s21 = scalar_select %p18, %s19, %s20
    %p24 = pneg %p18
    %p25 = scmp.eq.s32.totalorder %s9, 1
    %p26 = por %p24, %p25
    %p27 = scmp.ne.s32.totalorder %s19, %s22
    %p28 = scmp.eq.s32.totalorder %s9, 0
    %p29 = por %p27, %p28
    %p30 = scmp.ne.s32.totalorder %s19, %s22
    %p31 = scmp.eq.s32.totalorder %s14, 1
    %p32 = por %p30, %p31
    %p33 = scmp.ne.s32.totalorder %s22, %s23
    %p34 = scmp.eq.s32.totalorder %s14, 0
    %p35 = por %p33, %p34
    %p36 = scmp.ne.s32.totalorder %s22, %s23
    %p37 = scmp.eq.s32.totalorder %s15, 1
    %p38 = por %p36, %p37
    %p40 = scmp.ne.s32.totalorder %s23, %s39
    %p41 = scmp.eq.s32.totalorder %s15, 0
    %p42 = por %p40, %p41
    %s44 = sadd.s32 %s43, 1
    %p47 = scmp.eq.s32.totalorder %s9, 1
    %p48 = scmp.ne.s32.totalorder %s43, %s45
    %p49 = scmp.eq.s32.totalorder %s9, 0
    %p50 = por %p48, %p49
    %p51 = scmp.ne.s32.totalorder %s43, %s45
    %p52 = scmp.eq.s32.totalorder %s14, 1
    %p53 = por %p51, %p52
    %p54 = scmp.ne.s32.totalorder %s45, %s46
    %p55 = scmp.eq.s32.totalorder %s14, 0
    %p56 = por %p54, %p55
    %p57 = scmp.ne.s32.totalorder %s45, %s46
    %p58 = scmp.eq.s32.totalorder %s15, 1
    %p59 = por %p57, %p58
    %p61 = scmp.ne.s32.totalorder %s46, %s60
    %p62 = scmp.eq.s32.totalorder %s15, 0
    %p63 = por %p61, %p62
    %s65 = sadd.s32 %s64, 1
    %p68 = scmp.eq.s32.totalorder %s9, 1
    %p69 = scmp.ne.s32.totalorder %s64, %s66
    %p70 = scmp.eq.s32.totalorder %s9, 0
    %p71 = por %p69, %p70
    %p72 = scmp.ne.s32.totalorder %s64, %s66
    %p73 = scmp.eq.s32.totalorder %s14, 1
    %p74 = por %p72, %p73
    %p75 = scmp.ne.s32.totalorder %s66, %s67
    %p76 = scmp.eq.s32.totalorder %s14, 0
    %p77 = por %p75, %p76
    %p78 = scmp.ne.s32.totalorder %s66, %s67
    %p79 = scmp.eq.s32.totalorder %s15, 1
    %p80 = por %p78, %p79
    %p82 = scmp.ne.s32.totalorder %s67, %s81
    %p83 = scmp.eq.s32.totalorder %s15, 0
    %p84 = por %p82, %p83
    %s85 = ssub.s32 %s9, %s16
    %p86 = scmp.eq.s32.totalorder %s85, 0
    %s88 = sadd.s32 %s87, 1
    %s89 = scalar_select %p86, %s87, %s88
    %p92 = pneg %p86
    %p93 = scmp.eq.s32.totalorder %s9, 1
    %p94 = por %p92, %p93
    %p95 = scmp.ne.s32.totalorder %s87, %s90
    %p96 = scmp.eq.s32.totalorder %s9, 0
    %p97 = por %p95, %p96
    %p98 = scmp.ne.s32.totalorder %s87, %s90
    %p99 = scmp.eq.s32.totalorder %s14, 1
    %p100 = por %p98, %p99
    %p101 = scmp.ne.s32.totalorder %s90, %s91
    %p102 = scmp.eq.s32.totalorder %s14, 0
    %p103 = por %p101, %p102
    %p104 = scmp.ne.s32.totalorder %s90, %s91
    %p105 = scmp.eq.s32.totalorder %s15, 1
    %p106 = por %p104, %p105
    %p108 = scmp.ne.s32.totalorder %s91, %s107
    %p109 = scmp.eq.s32.totalorder %s15, 0
    %p110 = por %p108, %p109
    %p111 = scmp.le.s32.totalorder 1, %s9
    %p112 = scmp.lt.s32.totalorder %s9, 3
    %p113 = pnand %p111, %p112
    %p114 = pneg %p113
    // Predicated region
    $region9: #{tpu_custom_call.1} parent=5 // pred_check
      _
    $region10: #{tpu_custom_call.1} parent=5 // pred_check_branch
      %116 = sbr.rel (%p113) target = $region12
    $region11: #{tpu_custom_call.1} parent=5 // pred_region
      %s117 = ssub.s32 %s9, 1
      // Predicated region
      $region13: #{tpu_custom_call.1} parent=11 // pred_check
        %p118 = pneg %p56
      $region14: #{tpu_custom_call.1} parent=11 // pred_check_branch
        %120 = sbr.rel (%p118) target = $region16
      $region15: #{tpu_custom_call.1} parent=11 // pred_region
        _
      $region16: #{tpu_custom_call.1} parent=11 // pred_fallthru
        _
      // Predicated region
      $region17: #{tpu_custom_call.1} parent=11 // pred_check
        %p121 = pneg %p77
      $region18: #{tpu_custom_call.1} parent=11 // pred_check_branch
        %123 = sbr.rel (%p121) target = $region20
      $region19: #{tpu_custom_call.1} parent=11 // pred_region
        _
      $region20: #{tpu_custom_call.1} parent=11 // pred_fallthru
        _
    $region12: #{tpu_custom_call.1} parent=5 // pred_fallthru
      _
    %p124 = scmp.lt.s32.totalorder %s9, 2
    // Predicated region
    $region21: #{tpu_custom_call.1} parent=5 // pred_check
      %p125 = pneg %p124
    $region22: #{tpu_custom_call.1} parent=5 // pred_check_branch
      %127 = sbr.rel (%p125) target = $region24
    $region23: #{tpu_custom_call.1} parent=5 // pred_region
      // Predicated region
      $region25: #{tpu_custom_call.1} parent=23 // pred_check
        %p128 = pneg %p29
      $region26: #{tpu_custom_call.1} parent=23 // pred_check_branch
        %130 = sbr.rel (%p128) target = $region28
      $region27: #{tpu_custom_call.1} parent=23 // pred_region
        %p131 = scmp.lt.s32.totalorder %s9, 1
        %s132 = scalar_select %p131, %s9, 1
        %s133 = smul.addr %s132, 2
        %s134 = smul.addr %s133, 8
        %s135 = scalar_lea.vmem %s0, %s134
      $region28: #{tpu_custom_call.1} parent=23 // pred_fallthru
        _
    $region24: #{tpu_custom_call.1} parent=5 // pred_fallthru
      _
    %p136 = scmp.le.s32.totalorder 1, %s9
    %p137 = scmp.lt.s32.totalorder %s9, 3
    %p138 = pnand %p136, %p137
    %p139 = pneg %p138
    // Predicated region
    $region29: #{tpu_custom_call.1} parent=5 // pred_check
      _
    $region30: #{tpu_custom_call.1} parent=5 // pred_check_branch
      %141 = sbr.rel (%p138) target = $region32
    $region31: #{tpu_custom_call.1} parent=5 // pred_region
      %s142 = ssub.s32 %s9, 1
      %p143 = scmp.lt.s32.totalorder %s14, 1
      %s144 = scalar_select %p143, %s14, 1
      %s145 = smul.addr %s144, 2
      %s146 = smul.addr %s145, 8
      %s147 = scalar_lea.vmem %s0, %s146
      %p148 = pneg %p35
      %p149 = pneg %p32
      %p150 = pneg %p56
      %p151 = pneg %p53
      %p152 = pneg %p77
      %p153 = pneg %p74
      %p154 = pneg %p103
      %p155 = pneg %p100
      %p156 = scmp.lt.s32.totalorder %s14, 1
      %s157 = scalar_select %p156, %s14, 1
      %s158 = smul.addr %s157, 2
      %s159 = smul.addr %s158, 8
      %s160 = scalar_lea.vmem %s3, %s159
      %p161 = scmp.lt.s32.totalorder %s14, 1
      %s162 = scalar_select %p161, %s14, 1
      %s163 = smul.addr %s162, 2
      %s164 = smul.addr %s163, 8
      %s165 = scalar_lea.vmem %s0, %s164
      %p166 = scmp.lt.s32.totalorder %s14, 1
      %s167 = scalar_select %p166, %s14, 1
      %s168 = smul.addr %s167, 2
      %s169 = smul.addr %s168, 8
      %s170 = scalar_lea.vmem %s3, %s169
      %v171 = vld [vmem:[%s165] sm:$0xff]
      %v172 = vld [vmem:[%s165 + $0x8] sm:$0x1f]
      %vm175 = vcmask 1046528
      %v176 = vrot.slane %v171, 1
      %v177 = vrot.slane %v172, 1
      %v178 = vsel %vm175, %v176, %v177
      %179 = vrot.lane.b32.xlu0 %v178, 8
      %v180 = vpop.permute.xlu0 %179
      %181 = vrot.lane.b32.xlu0 %v177, 8
      %v182 = vpop.permute.xlu0 %181
      %vm185 = vcmask 1045504
      %v186 = vrot.slane %v171, 2
      %v187 = vrot.slane %v172, 2
      %v188 = vsel %vm185, %v186, %v187
      %189 = vrot.lane.b32.xlu0 %v188, 16
      %v190 = vpop.permute.xlu0 %189
      %191 = vrot.lane.b32.xlu0 %v187, 16
      %v192 = vpop.permute.xlu0 %191
      %vm195 = vcmask 64512
      %v196 = vsel %vm195, %v171, %v180
      %v197 = vsel %vm195, %v172, %v182
      %vm198 = vcmask 130048
      %v199 = vsel %vm198, %v196, %v190
      %v200 = vsel %vm198, %v197, %v192
      %v201 = vld [vmem:[%s1] sm:$0xff]
      %v202 = vld [vmem:[%s1 + $0x8] sm:$0xff]
      %v203 = vld [vmem:[%s1 + $0x10] sm:$0xff]
      %v204 = vld [vmem:[%s2] sm:$0x1]
      %v206 = vperm.slane %v204, 0
      %vm208 = vcmask 195584
      %v210 = vsel %vm208, %v199, 0
      %v213 = vsel %vm208, %v200, 0
      %215 = vmatpush.msra.mxu0 0.0
      %216 = vmatpush.msra.mxu0 0.0
      %217 = vmatpush.msra.mxu0 0.0
      %218 = vmatpush.msra.mxu0 0.0
      %219 = vmatpush.msra.mxu0 0.0
      %220 = vmatpush.msra.mxu0 0.0
      %221 = vmatpush.msra.mxu0 0.0
      %222 = vmatpush.msra.mxu0 0.0
      %223 = vmatpush.msra.mxu0 0.0
      %224 = vmatpush.msra.mxu0 0.0
      %225 = vmatpush.msra.mxu0 0.0
      %226 = vmatpush.msra.mxu0 0.0
      %227 = vmatpush.msra.mxu0 0.0
      %228 = vmatpush.msra.mxu0 %v203
      %229 = vmatpush.msra.mxu0 %v202
      %230 = vmatpush.msra.mxu0 %v201
      %231 = vmatmul.f32.gmra.mxu0 %v210
      %v232 = vpop.f32.mrf.mxu0
      %v233 = vadd.f32 %v206, %v232
      %234 = vmatmul.f32.gmra.mxu0 %v213
      %v235 = vpop.f32.mrf.mxu0
      %v236 = vadd.f32 %v206, %v235
      %237 = vdwg.mxu0
      %v238 = vmax.f32 %v233, 0.0
      %v239 = vmax.f32 %v236, 0.0
      %v242 = vrot.slane %v238, 1
      %v243 = vrot.slane %v239, 1
      %v244 = vsel %vm175, %v242, %v243
      %v247 = vmax.f32 %v238, %v244
      %v248 = vmax.f32 %v239, %v243
      %v251 = vrot.slane %v247, 2
      %v252 = vrot.slane %v247, 4
      %v253 = vrot.slane %v247, 6
      %v254 = vperm.slane %v247, 0
      %v255 = vperm.slane %v251, 0
      %v256 = vperm.slane %v252, 0
      %v257 = vperm.slane %v253, 0
      %v258 = vperm.slane %v248, 0
      %vm259 = vcmask 1041409
      %v260 = vsel %vm259, %v255, %v254
      %vm261 = vcmask 1042434
      %v262 = vsel %vm261, %v256, %v260
      %vm263 = vcmask 1043459
      %v264 = vsel %vm263, %v257, %v262
      %vm265 = vcmask 1044484
      %v266 = vsel %vm265, %v258, %v264
      %vm268 = vcmask 126976
      %269 = vst.msk [vmem:[%s170] sm:$0x1f] %vm268, %v266
      %v270 = vperm.slane %v247, 1
      %v271 = vperm.slane %v251, 1
      %v272 = vperm.slane %v252, 1
      %v273 = vperm.slane %v253, 1
      %v274 = vperm.slane %v248, 1
      %v275 = vsel %vm261, %v271, %v270
      %v276 = vsel %vm263, %v272, %v275
      %v277 = vsel %vm265, %v273, %v276
      %vm278 = vcmask 1045509
      %v279 = vsel %vm278, %v274, %v277
      %s281 = scalar_lea.vmem %s170, 8
      %vm282 = vcmask 128001
      %283 = vst.msk [vmem:[%s281 - $0x1] sm:$0x3e] %vm282, %v279
      %p284 = scmp.lt.s32.totalorder %s14, 1
      %s285 = scalar_select %p284, %s14, 1
      %s286 = smul.addr %s285, 2
      %s287 = smul.addr %s286, 8
      %s288 = scalar_lea.vmem %s3, %s287
      // Predicated region
      $region33: #{tpu_custom_call.1} parent=31 // pred_check
        %p289 = pneg %p100
      $region34: #{tpu_custom_call.1} parent=31 // pred_check_branch
        %291 = sbr.rel (%p289) target = $region36
      $region35: #{tpu_custom_call.1} parent=31 // pred_region
        _
      $region36: #{tpu_custom_call.1} parent=31 // pred_fallthru
        _
    $region32: #{tpu_custom_call.1} parent=5 // pred_fallthru
      _
    %p292 = scmp.le.s32.totalorder 2, %s9
    // Predicated region
    $region37: #{tpu_custom_call.1} parent=5 // pred_check
      %p293 = pneg %p292
    $region38: #{tpu_custom_call.1} parent=5 // pred_check_branch
      %295 = sbr.rel (%p293) target = $region40
    $region39: #{tpu_custom_call.1} parent=5 // pred_region
      %s296 = ssub.s32 %s9, 2
      // Predicated region
      $region41: #{tpu_custom_call.1} parent=39 // pred_check
        %p297 = pneg %p106
      $region42: #{tpu_custom_call.1} parent=39 // pred_check_branch
        %299 = sbr.rel (%p297) target = $region44
      $region43: #{tpu_custom_call.1} parent=39 // pred_region
        %p300 = scmp.lt.s32.totalorder %s15, 1
        %s301 = scalar_select %p300, %s15, 1
        %s302 = smul.addr %s301, 2
        %s303 = smul.addr %s302, 8
        %s304 = scalar_lea.vmem %s3, %s303
      $region44: #{tpu_custom_call.1} parent=39 // pred_fallthru
        _
    $region40: #{tpu_custom_call.1} parent=5 // pred_fallthru
      _
  $region6: #{tpu_custom_call.1} parent=0 // loop_footer
    %s13 = sadd.s32 1, %s9
  $region7: #{tpu_custom_call.1} parent=0 // loop_footer_branch
    %8 = sbr.rel target = $region3
  $region8: #{tpu_custom_call.1} parent=0 // loop_exit
    _

</llo_original>
